<compile_context>
chip_gen: v7x
topology: tpu7x:2x2x1
jax: 0.10.0
libtpu: 0.0.40
codegen_flags: <defaults>
</compile_context>

<pallas_src>
import functools

import jax
import jax.numpy as jnp
from jax import lax
from jax.experimental import pallas as pl
from jax.experimental.pallas import tpu as pltpu

DEFAULT_DECAY = 0.998
_LANES = 128
_SUBLANES = 8
_EMA_TILE_ROWS = 1024  # (1024, 128) f32 block = 512 KiB per operand per buffer


def _round_up(x, m):
    return (x + m - 1) // m * m


# ---------------------------------------------------------------------------
# Param packing glue (plain JAX): state_dict tensors <-> (R, 128) f32 slab.
# Done ONCE per parameter set, not per update step.
# ---------------------------------------------------------------------------
def pack_params(params):
    flats = [jnp.asarray(p, jnp.float32).reshape(-1) for p in params]
    cat = flats[0] if len(flats) == 1 else jnp.concatenate(flats)
    pad = (-cat.size) % (_SUBLANES * _LANES)
    cat = jnp.pad(cat, (0, pad))
    return cat.reshape(-1, _LANES)


def unpack_params(slab, sizes, shapes):
    flat = slab.reshape(-1)
    out, off = [], 0
    for n, sh in zip(sizes, shapes):
        out.append(flat[off:off + n].reshape(sh))
        off += n
    return out


def _as_slab(model):
    if isinstance(model, (list, tuple)):
        return pack_params(model)
    return model  # already a packed (R, 128) slab


# ---------------------------------------------------------------------------
# Kernel 1: EMA parameter update   e_new = e + (1 - decay) * (m - e)
#   decay comes in through SMEM (not baked into the trace).
# ---------------------------------------------------------------------------
def _ema_update_kernel(e_ref, m_ref, decay_ref, o_ref):
    e = e_ref[...]
    one_minus = 1.0 - decay_ref[0]
    o_ref[...] = e + one_minus * (m_ref[...] - e)


@functools.partial(jax.jit, donate_argnums=(0,))
def ema_update_slab(ema_slab, model_slab, decay):
    """Tiled, in-place EMA update on (R, 128) float32 slabs of packed params."""
    R, C = ema_slab.shape
    tr = min(_EMA_TILE_ROWS, R)  # R is always a multiple of 8 (packing pads)
    grid = (pl.cdiv(R, tr),)
    return pl.pallas_call(
        _ema_update_kernel,
        out_shape=jax.ShapeDtypeStruct((R, C), ema_slab.dtype),
        grid=grid,
        in_specs=[
            pl.BlockSpec((tr, C), lambda i: (i, 0)),
            pl.BlockSpec((tr, C), lambda i: (i, 0)),
            pl.BlockSpec(memory_space=pltpu.MemorySpace.SMEM),
        ],
        out_specs=pl.BlockSpec((tr, C), lambda i: (i, 0)),
        input_output_aliases={0: 0},  # overwrite the EMA slab in place
        compiler_params=pltpu.CompilerParams(
            dimension_semantics=("parallel",)),
    )(ema_slab, model_slab, decay)


# ---------------------------------------------------------------------------
# Kernel 2: forward of the (EMA) inner Linear model: y = x @ W.T + b
#   Tiled MXU matmul, no in-kernel transpose (dot_general contracts W axis 1).
# ---------------------------------------------------------------------------
def _linear_kernel(x_ref, w_ref, b_ref, o_ref, acc_ref):
    @pl.when(pl.program_id(2) == 0)
    def _():
        acc_ref[...] = jnp.zeros_like(acc_ref)

    acc_ref[...] += lax.dot_general(
        x_ref[...], w_ref[...],
        dimension_numbers=(((1,), (1,)), ((), ())),  # contract K of x with K of W
        preferred_element_type=jnp.float32)

    @pl.when(pl.program_id(2) == pl.num_programs(2) - 1)
    def _():
        o_ref[...] = (acc_ref[...] + b_ref[...]).astype(o_ref.dtype)


def _mxu_tile():
    """256-aligned tiles for v6e/v7x (2x256^2 MXU), 128 for v5e (4x128^2)."""
    try:
        kind = jax.devices()[0].device_kind.lower()
        if "v5 lite" in kind or "v5e" in kind or "v5litepod" in kind:
            return 128
    except Exception:
        pass
    return 256


@functools.partial(jax.jit, static_argnames=("tile",))
def _linear_fwd_2d(x2d, w, b, *, tile):
    M, K = x2d.shape
    N = w.shape[0]
    tm = tn = tk = tile
    Mp, Np, Kp = _round_up(M, tm), _round_up(N, tn), _round_up(K, tk)
    # Pad to lane-dense, MXU-aligned tiles (zero padding on K is exact).
    xp = jnp.pad(x2d, ((0, Mp - M), (0, Kp - K)))
    wp = jnp.pad(w, ((0, Np - N), (0, Kp - K)))
    bp = jnp.pad(b.reshape(1, N), ((0, 0), (0, Np - N)))

    yp = pl.pallas_call(
        _linear_kernel,
        out_shape=jax.ShapeDtypeStruct((Mp, Np), x2d.dtype),
        grid=(Mp // tm, Np // tn, Kp // tk),
        in_specs=[
            pl.BlockSpec((tm, tk), lambda i, j, k: (i, k)),   # x tile
            pl.BlockSpec((tn, tk), lambda i, j, k: (j, k)),   # W tile (row-major, no .T)
            pl.BlockSpec((1, tn), lambda i, j, k: (0, j)),    # bias tile
        ],
        out_specs=pl.BlockSpec((tm, tn), lambda i, j, k: (i, j)),
        scratch_shapes=[pltpu.VMEM((tm, tn), jnp.float32)],
        compiler_params=pltpu.CompilerParams(
            dimension_semantics=("parallel", "parallel", "arbitrary")),
    )(xp, wp, bp)
    return yp[:M, :N]


def ema_forward(x, w, b):
    """x: (B, S, H) float32, w: (H, H), b: (H,). Returns (B, S, H)."""
    B, S, H = x.shape
    y2d = _linear_fwd_2d(x.reshape(B * S, H), w, b, tile=_mxu_tile())
    return y2d.reshape(B, S, H)


# ---------------------------------------------------------------------------
# EMAModel analogue
# ---------------------------------------------------------------------------
class EMAModelPallas:
    """JAX/Pallas analogue of EMAModel wrapping a Linear(H, H) inner model."""

    def __init__(self, model_params, decay_rate=DEFAULT_DECAY):
        params = [jnp.asarray(p, jnp.float32) for p in model_params]
        self._shapes = [p.shape for p in params]
        self._sizes = [int(p.size) for p in params]
        self._decay = jnp.full((1,), decay_rate, jnp.float32)
        # deepcopy semantics: EMA params start as a (packed) copy of the model.
        self._slab = pack_params(params)
        self._cached = params  # per-tensor views, rebuilt lazily after updates

    def pack(self, model_params):
        """Pack a model's params into the slab layout (do once per model)."""
        return pack_params(model_params)

    def update(self, model):
        """EMA update.  `model` is a list of param arrays or a packed slab."""
        m_slab = _as_slab(model)
        self._slab = ema_update_slab(self._slab, m_slab, self._decay)
        self._cached = None

    def set(self, model):
        """Hard copy of the given model's parameters (update_fn = lambda e, m: m)."""
        m_slab = _as_slab(model)
        self._slab = jnp.array(m_slab)
        self._cached = None

    @property
    def params(self):
        if self._cached is None:
            self._cached = unpack_params(self._slab, self._sizes, self._shapes)
        return self._cached

    def __call__(self, x):
        w, b = self.params
        return ema_forward(x, w, b)


if __name__ == "__main__":
    key = jax.random.PRNGKey(0)
    k_w0, k_b0, k_w1, k_b1, k_x = jax.random.split(key, 5)

    B, S, H = 2, 8, 32

    # Original inner model parameters (Linear(H, H): weight (H, H), bias (H,)).
    w0 = jax.random.normal(k_w0, (H, H), jnp.float32) * 0.05
    b0 = jax.random.normal(k_b0, (H,), jnp.float32) * 0.05
    # "Trained" model parameters used for the EMA update step.
    w1 = jax.random.normal(k_w1, (H, H), jnp.float32) * 0.05
    b1 = jax.random.normal(k_b1, (H,), jnp.float32) * 0.05

    x = jax.random.normal(k_x, (B, S, H), jnp.float32)

    ema = EMAModelPallas([w0, b0], decay_rate=DEFAULT_DECAY)

    # Pack the trained model's params once; the update itself is a single
    # tiled, input/output-aliased Pallas call on the packed slabs.
    m_slab = ema.pack([w1, b1])
    ema.update(m_slab)            # Pallas EMA-update kernel (in-place slab)
    y = ema(x)                    # Pallas tiled-matmul forward kernel
    y = jax.block_until_ready(y)

    # Reference check in plain JAX.
    w_ref = DEFAULT_DECAY * w0 + (1.0 - DEFAULT_DECAY) * w1
    b_ref = DEFAULT_DECAY * b0 + (1.0 - DEFAULT_DECAY) * b1
    y_ref = jnp.einsum("bsh,oh->bso", x, w_ref) + b_ref

    assert y.shape == (B, S, H)
    assert jnp.allclose(y, y_ref, atol=1e-5, rtol=1e-5)

    print("KERNEL_OK")
</pallas_src>

<mosaic_0001>
module attributes {stable_mosaic.version = 11 : i64} {
  func.func @_ema_update_kernel(%arg0: i32, %arg1: memref<16x128xf32, #tpu.memory_space<vmem>>, %arg2: memref<16x128xf32, #tpu.memory_space<vmem>>, %arg3: memref<1xf32, #tpu.memory_space<smem>>, %arg4: memref<16x128xf32, #tpu.memory_space<vmem>>) attributes {dimension_semantics = [#tpu.dimension_semantics<parallel>], iteration_bounds = array<i64: 1>, scalar_prefetch = 0 : i64, scratch_operands = 0 : i64, tpu.core_type = #tpu.core_type<tc>, window_params = [{transform_indices = @transform_0, window_bounds = array<i64: 16, 128>}, {transform_indices = @transform_1, window_bounds = array<i64: 16, 128>}, {transform_indices = @transform_2, window_bounds = array<i64: 1>}, {transform_indices = @transform_3, window_bounds = array<i64: 16, 128>}]} {
    %c0 = arith.constant 0 : index
    %c0_0 = arith.constant 0 : index
    %0 = vector.load %arg1[%c0, %c0_0] : memref<16x128xf32, #tpu.memory_space<vmem>>, vector<16x128xf32>
    %c0_1 = arith.constant 0 : index
    %1 = memref.load %arg3[%c0_1] : memref<1xf32, #tpu.memory_space<smem>>
    %cst = arith.constant 1.000000e+00 : f32
    %2 = arith.subf %cst, %1 : f32
    %c0_2 = arith.constant 0 : index
    %c0_3 = arith.constant 0 : index
    %3 = vector.load %arg2[%c0_2, %c0_3] : memref<16x128xf32, #tpu.memory_space<vmem>>, vector<16x128xf32>
    %4 = arith.subf %3, %0 : vector<16x128xf32>
    %5 = vector.broadcast %2 : f32 to vector<16x128xf32>
    %6 = arith.mulf %5, %4 : vector<16x128xf32>
    %7 = arith.addf %0, %6 : vector<16x128xf32>
    %c0_4 = arith.constant 0 : index
    %c0_5 = arith.constant 0 : index
    %8 = vector.load %arg4[%c0_4, %c0_5] : memref<16x128xf32, #tpu.memory_space<vmem>>, vector<16x128xf32>
    tpu.vector_store %arg4[%c0_4, %c0_5], %7 {strides = array<i32>} : memref<16x128xf32, #tpu.memory_space<vmem>>, vector<16x128xf32>,
    return
  }
  func.func @transform_0(%arg0: i32) -> (i32, i32) {
    %c0_i32 = arith.constant 0 : i32
    %c0_i32_0 = arith.constant 0 : i32
    return %arg0, %c0_i32 : i32, i32
  }
  func.func @transform_1(%arg0: i32) -> (i32, i32) {
    %c0_i32 = arith.constant 0 : i32
    %c0_i32_0 = arith.constant 0 : i32
    return %arg0, %c0_i32 : i32, i32
  }
  func.func @transform_2(%arg0: i32) -> i32 {
    %c0_i32 = arith.constant 0 : i32
    %c0_i32_0 = arith.constant 0 : i32
    return %c0_i32 : i32
  }
  func.func @transform_3(%arg0: i32) -> (i32, i32) {
    %c0_i32 = arith.constant 0 : i32
    %c0_i32_0 = arith.constant 0 : i32
    return %arg0, %c0_i32 : i32, i32
  }
}

</mosaic_0001>

<llo_original>
// kernel: ema_update_slab.1
$region0: #{ema_update_slab.1}
  #allocation0 [shape = 'u32[]', space=smem, size = 0x4, offset = 0x4, fixed_abs, tag = 'smem constant byte address 0x4 - core index']
  #allocation1 [shape = 'u32[144,128]{1,0:T(1,128)}', space=vmem, size = 0x12000, scoped, tag = 'internal scratch']
  #allocation2 [shape = 'f32[1]{0:T(128)S(6)}', space=smem, size = 0x200, scoped, tag = 'scoped memory for ema_update_slab.1']
  %s0 = inlined_call_operand.hbm [shape: f32[16,128], index: 0, kind: input, shape index: {}, may-alias: {0,3}]
  %s1 = inlined_call_operand.hbm [shape: f32[16,128], index: 1, kind: input, shape index: {}]
  %s2 = inlined_call_operand.<no memory space> [shape: f32[1], index: 2, kind: input, shape index: {}]
  %s3 = inlined_call_operand.hbm [shape: f32[16,128], index: 3, kind: output, shape index: {}, may-alias: {0,3}]
  %s4 = sld [smem:[#allocation0]]
  $region30: #{ema_update_slab.1} parent=0
    _
  %s6 = ssub.s32 1, %s4
  %s7 = scalar_select 0, %s6, %s4
  %8 = sst [smem:[#allocation2]] %s2
  $region1: #{ema_update_slab.1} parent=0
    #allocation3 [shape = 'u8[8192]{0}', space=vmem, size = 0x2000, scoped, tag = 'input window, operand 0, single buffered']
    #allocation4 [shape = 's32[1]{0}', space=sflag, size = 0x4, scoped, tag = 'scoped memory for ema_update_slab.1']
    #allocation5 [shape = 's32[1]{0}', space=sflag, size = 0x4, scoped, tag = 'scoped memory for ema_update_slab.1']
    #allocation6 [shape = 'u8[8192]{0}', space=vmem, size = 0x2000, scoped, tag = 'input window, operand 1, single buffered']
    #allocation7 [shape = 's32[1]{0}', space=sflag, size = 0x4, scoped, tag = 'scoped memory for ema_update_slab.1']
    #allocation8 [shape = 'u8[8192]{0}', space=vmem, size = 0x2000, scoped, tag = 'output window, operand 0, single buffered']
    %9 = vsyncpa [#allocation4], 0
    %10 = vsyncpa [#allocation7], 0
    %11 = vsyncpa [#allocation5], 0
    // Predicated region
    $region2: #{ema_update_slab.1} parent=1 // pred_check
      _
    $region3: #{ema_update_slab.1} parent=1 // pred_check_branch
      %13 = sbr.rel (0) target = $region5
    $region4: #{ema_update_slab.1} parent=1 // pred_region
      %s15 = ssub.s32 256, 256
      %16 = vsyncadd [#allocation4], %s15
      %s17 = sshll.u32 [#allocation3], 4
      %s18 = int_to_ptr.vmem [resolvable:$true] %s17
      %23 = dma.hbm_to_vmem [thread:$0]  %s0, 256, %s18, [#allocation4], 128, 128, 8
    $region5: #{ema_update_slab.1} parent=1 // pred_fallthru
      _
    // Predicated region
    $region6: #{ema_update_slab.1} parent=1 // pred_check
      _
    $region7: #{ema_update_slab.1} parent=1 // pred_check_branch
      %25 = sbr.rel (0) target = $region9
    $region8: #{ema_update_slab.1} parent=1 // pred_region
      %s27 = ssub.s32 256, 256
      %28 = vsyncadd [#allocation7], %s27
      %s29 = sshll.u32 [#allocation6], 4
      %s30 = int_to_ptr.vmem [resolvable:$true] %s29
      %35 = dma.hbm_to_vmem [thread:$0]  %s1, 256, %s30, [#allocation7], 128, 128, 8
    $region9: #{ema_update_slab.1} parent=1 // pred_fallthru
      _
    // Predicated region
    $region10: #{ema_update_slab.1} parent=1 // pred_check
      _
    $region11: #{ema_update_slab.1} parent=1 // pred_check_branch
      %37 = sbr.rel (0) target = $region13
    $region12: #{ema_update_slab.1} parent=1 // pred_region
      _
    $region13: #{ema_update_slab.1} parent=1 // pred_fallthru
      _
    // Predicated region
    $region14: #{ema_update_slab.1} parent=1 // pred_check
      _
    $region15: #{ema_update_slab.1} parent=1 // pred_check_branch
      %39 = sbr.rel (0) target = $region17
    $region16: #{ema_update_slab.1} parent=1 // pred_region
      %40 = dma.done [#allocation4], 256
    $region17: #{ema_update_slab.1} parent=1 // pred_fallthru
      _
    // Predicated region
    $region18: #{ema_update_slab.1} parent=1 // pred_check
      _
    $region19: #{ema_update_slab.1} parent=1 // pred_check_branch
      %42 = sbr.rel (0) target = $region21
    $region20: #{ema_update_slab.1} parent=1 // pred_region
      %43 = dma.done [#allocation7], 256
    $region21: #{ema_update_slab.1} parent=1 // pred_fallthru
      _
    %v44 = vld [vmem:[#allocation3] sm:$0xff]
    %v45 = vld [vmem:[#allocation3 + $0x8] sm:$0xff]
    %s46 = sld [smem:[#allocation2]]
    %s47 = ssub.f32 1.0, %s46
    %v48 = vld [vmem:[#allocation6] sm:$0xff]
    %v49 = vld [vmem:[#allocation6 + $0x8] sm:$0xff]
    %v50 = vsub.f32 %v48, %v44
    %v51 = vsub.f32 %v49, %v45
    %v52 = vstv %s47
    %v53 = vmul.f32 %v52, %v50
    %v54 = vmul.f32 %v52, %v51
    %v55 = vadd.f32 %v44, %v53
    %v56 = vadd.f32 %v45, %v54
    %57 = vst [vmem:[#allocation8] sm:$0xff] %v55
    %58 = vst [vmem:[#allocation8 + $0x8] sm:$0xff] %v56
    // Predicated region
    $region22: #{ema_update_slab.1} parent=1 // pred_check
      _
    $region23: #{ema_update_slab.1} parent=1 // pred_check_branch
      %60 = sbr.rel (0) target = $region25
    $region24: #{ema_update_slab.1} parent=1 // pred_region
      %s62 = ssub.s32 256, 256
      %63 = vsyncadd [#allocation5], %s62
      %s64 = sshll.u32 [#allocation8], 4
      %s65 = int_to_ptr.vmem [resolvable:$true] %s64
      %70 = dma.vmem_to_hbm [thread:$0]  %s65, 256, %s3, [#allocation5], 128, 128, 8
    $region25: #{ema_update_slab.1} parent=1 // pred_fallthru
      _
    // Predicated region
    $region26: #{ema_update_slab.1} parent=1 // pred_check
      _
    $region27: #{ema_update_slab.1} parent=1 // pred_check_branch
      %72 = sbr.rel (0) target = $region29
    $region28: #{ema_update_slab.1} parent=1 // pred_region
      %73 = dma.done [#allocation5], 256
    $region29: #{ema_update_slab.1} parent=1 // pred_fallthru
      _
    %74 = vsyncpa [#allocation4], 1
    %75 = vsyncpa [#allocation7], 1
    %76 = vsyncpa [#allocation5], 1

</llo_original>
